<compile_context>
chip_gen: v5e
topology: v5e:2x2
jax: 0.10.0
libtpu: 0.0.40
codegen_flags: <defaults>
</compile_context>

<pallas_src>
import jax
import jax.numpy as jnp
from jax.experimental import pallas as pl
from jax.experimental.pallas import tpu as pltpu

# ---- module hyper-parameters (PyTorch defaults) ----
C_IN = 103
C1 = 30
C2 = 15
C3 = 15
C4 = 30
NEG_SLOPE = 0.01  # F.leaky_relu default

# Row offsets inside the stacked-weight MXU results (8/16-aligned starts so
# in-kernel sublane slices of the f32 results never need unaligned relayouts).
OFF2_Y2 = 0              # rows of r2 holding conv2 output
OFF2_Y3 = 16             # rows of r2 holding conv3's x1-contribution
OFF2_Y4 = 32             # rows of r2 holding conv4's x1-contribution
R2_ROWS = OFF2_Y4 + C4   # 62
OFF3_Y3 = 0              # rows of r3 holding conv3's x2-contribution
OFF3_Y4 = 16             # rows of r3 holding conv4's x2-contribution
R3_ROWS = OFF3_Y4 + C4   # 46


def _round_up(a, b):
    return ((a + b - 1) // b) * b


def _leaky_relu(x):
    return jnp.where(x > 0, x, NEG_SLOPE * x)


def pixelwise_kernel(
    x_ref,             # (C_IN, T)      f32
    w1_ref, b1_ref,    # (C1, C_IN) bf16, (C1, 1) f32
    w2s_ref, b2_ref,   # (R2_ROWS, C1) bf16  [conv2 | conv3[:, :C1] | conv4[:, :C1]]
    w3s_ref, b3_ref,   # (R3_ROWS, C2) bf16  [conv3[:, C1:] | conv4[:, C1:C1+C2]]
    w4t_ref, b4_ref,   # (C4, C3) bf16       [conv4[:, C1+C2:]]
    out_ref,           # (C4, T)
):
    f32 = jnp.float32
    cdt = w1_ref.dtype                            # compute dtype (bf16 by default)

    x = x_ref[...].astype(cdt)                    # in-kernel cast, VPU (free)

    # conv1 + leaky_relu
    y1 = jnp.dot(w1_ref[...], x, preferred_element_type=f32) + b1_ref[...]
    x1c = _leaky_relu(y1).astype(cdt)

    # one MXU push over x1 feeds conv2 and the x1-parts of conv3 / conv4
    r2 = jnp.dot(w2s_ref[...], x1c, preferred_element_type=f32)        # (62, T)
    x2c = _leaky_relu(r2[OFF2_Y2:OFF2_Y2 + C2] + b2_ref[...]).astype(cdt)

    # one MXU push over x2 feeds the x2-parts of conv3 / conv4
    r3 = jnp.dot(w3s_ref[...], x2c, preferred_element_type=f32)        # (46, T)
    y3 = r2[OFF2_Y3:OFF2_Y3 + C3] + r3[OFF3_Y3:OFF3_Y3 + C3] + b3_ref[...]
    x3c = _leaky_relu(y3).astype(cdt)

    # conv4: x3-part plus the already-computed x1/x2 parts; NO activation
    r4 = jnp.dot(w4t_ref[...], x3c, preferred_element_type=f32)        # (30, T)
    y4 = (r2[OFF2_Y4:OFF2_Y4 + C4] + r3[OFF3_Y4:OFF3_Y4 + C4] + r4
          + b4_ref[...])

    out_ref[...] = y4.astype(out_ref.dtype)


def _pack_weights(params, compute_dtype):
    (w1, b1, w2, b2, w3, b3, w4, b4) = params
    # PyTorch conv weights are (C_out, C_in, 1, 1) -> (C_out, C_in) matrices.
    w1m = w1.reshape(C1, C_IN).astype(jnp.float32)
    w2m = w2.reshape(C2, C1).astype(jnp.float32)
    w3m = w3.reshape(C3, C1 + C2).astype(jnp.float32)
    w4m = w4.reshape(C4, C1 + C2 + C3).astype(jnp.float32)

    zrow = lambda r, c: jnp.zeros((r, c), jnp.float32)
    # Stack along C_out so each activation needs a single MXU push; zero rows
    # keep every result-slice start 8/16-aligned.
    w2_stack = jnp.concatenate(
        [w2m,                       zrow(OFF2_Y3 - (OFF2_Y2 + C2), C1),
         w3m[:, :C1],               zrow(OFF2_Y4 - (OFF2_Y3 + C3), C1),
         w4m[:, :C1]], axis=0)                                    # (62, 30)
    w3_stack = jnp.concatenate(
        [w3m[:, C1:],               zrow(OFF3_Y4 - (OFF3_Y3 + C3), C2),
         w4m[:, C1:C1 + C2]], axis=0)                             # (46, 15)
    w4_tail = w4m[:, C1 + C2:]                                    # (30, 15)

    cast = lambda w: w.astype(compute_dtype)
    # Biases stay f32 (added to the f32 MXU accumulator).
    return (cast(w1m), b1.reshape(C1, 1).astype(jnp.float32),
            cast(w2_stack), b2.reshape(C2, 1).astype(jnp.float32),
            cast(w3_stack), b3.reshape(C3, 1).astype(jnp.float32),
            cast(w4_tail), b4.reshape(C4, 1).astype(jnp.float32))


def _choose_tile(HW_pad, N, tile_pix):
    """Largest multiple-of-128 divisor of HW_pad that fits the tile budget."""
    cap = min(_round_up(tile_pix, 128), HW_pad)
    if N == 1:
        # Give v7x's two TensorCores at least two parallel grid slices.
        cap = min(cap, max(128, _round_up(HW_pad // 2, 128)))
    tile = 128
    for t in range(cap, 0, -128):
        if HW_pad % t == 0:
            tile = t
            break
    return tile


def pixelwise_forward(x_nchw, params, tile_pix=4096,
                      compute_dtype=jnp.bfloat16, out_dtype=jnp.float32):
    """x_nchw: (N, C_IN, H, W) float32.  Returns (N, C4, H, W) `out_dtype`."""
    N, C, H, W = x_nchw.shape
    assert C == C_IN
    HW = H * W

    HW_pad = _round_up(HW, 128)
    tile = _choose_tile(HW_pad, N, tile_pix)
    n_tiles = HW_pad // tile

    # NCHW -> (N, C, HW): free reshape; channels on sublanes, pixels on lanes.
    # No dtype cast here: the f32 tensor is read directly by the kernel.
    x = x_nchw.reshape(N, C_IN, HW)
    if HW_pad != HW:                       # only when HW % 128 != 0 (< 128 px pad)
        x = jnp.pad(x, ((0, 0), (0, 0), (0, HW_pad - HW)))

    wb = _pack_weights(params, compute_dtype)

    full = lambda shape: pl.BlockSpec(shape, lambda n, t: (0, 0))

    out = pl.pallas_call(
        pixelwise_kernel,
        out_shape=jax.ShapeDtypeStruct((N, C4, HW_pad), out_dtype),
        grid_spec=pltpu.PrefetchScalarGridSpec(
            num_scalar_prefetch=0,
            grid=(N, n_tiles),
            in_specs=[
                pl.BlockSpec((None, C_IN, tile), lambda n, t: (n, 0, t)),
                full((C1, C_IN)), full((C1, 1)),
                full((R2_ROWS, C1)), full((C2, 1)),
                full((R3_ROWS, C2)), full((C3, 1)),
                full((C4, C3)), full((C4, 1)),
            ],
            out_specs=pl.BlockSpec((None, C4, tile), lambda n, t: (n, 0, t)),
        ),
        compiler_params=pltpu.CompilerParams(
            dimension_semantics=("parallel", "parallel"),
            vmem_limit_bytes=32 * 1024 * 1024),
    )(x, *wb)

    if HW_pad != HW:
        out = out[:, :, :HW]
    return out.reshape(N, C4, H, W)


def pixelwise_reference(x_nchw, params):
    """Pure-JAX f32 reference of the PyTorch forward pass (1x1 convs as matmuls)."""
    (w1, b1, w2, b2, w3, b3, w4, b4) = params
    N, C, H, W = x_nchw.shape
    x = jnp.transpose(x_nchw, (0, 2, 3, 1)).reshape(-1, C)

    def lrelu(v):
        return jnp.where(v > 0, v, NEG_SLOPE * v)

    x1 = lrelu(x @ w1.reshape(C1, C_IN).T + b1)
    x2 = lrelu(x1 @ w2.reshape(C2, C1).T + b2)
    x3 = lrelu(jnp.concatenate([x1, x2], -1) @ w3.reshape(C3, C1 + C2).T + b3)
    x4 = jnp.concatenate([x1, x2, x3], -1) @ w4.reshape(C4, C1 + C2 + C3).T + b4
    return jnp.transpose(x4.reshape(N, H, W, C4), (0, 3, 1, 2))


def init_params(key):
    """Deterministic synthetic parameters with PyTorch Conv2d shapes."""
    ks = jax.random.split(key, 8)

    def conv_init(kw, kb, c_out, c_in):
        bound = 1.0 / jnp.sqrt(jnp.float32(c_in))
        w = jax.random.uniform(kw, (c_out, c_in, 1, 1), jnp.float32, -bound, bound)
        b = jax.random.uniform(kb, (c_out,), jnp.float32, -bound, bound)
        return w, b

    w1, b1 = conv_init(ks[0], ks[1], C1, C_IN)
    w2, b2 = conv_init(ks[2], ks[3], C2, C1)
    w3, b3 = conv_init(ks[4], ks[5], C3, C1 + C2)
    w4, b4 = conv_init(ks[6], ks[7], C4, C1 + C2 + C3)
    return (w1, b1, w2, b2, w3, b3, w4, b4)


if __name__ == "__main__":
    key = jax.random.PRNGKey(0)
    k_x, k_x2, k_p = jax.random.split(key, 3)
    params = init_params(k_p)

    # Case 1: small batch, HW already a multiple of 128 (no pad / no slice).
    N, H, W = 2, 16, 16   # HW = 256 -> tile = 256, grid = (2, 1)
    x = jax.random.normal(k_x, (N, C_IN, H, W), jnp.float32)
    out = jax.block_until_ready(pixelwise_forward(x, params))
    ref = pixelwise_reference(x, params)
    assert out.shape == (N, C4, H, W)
    # bf16 weights/activations (f32 accumulation): relaxed tolerance vs f32 ref.
    assert jnp.allclose(out, ref, atol=5e-2, rtol=5e-2), "mismatch vs reference (case 1)"

    # Case 2: single image with ragged HW (exercises <128px pad, trailing slice,
    # and the N==1 two-tile split so both v7x TensorCores would get work).
    x2 = jax.random.normal(k_x2, (1, C_IN, 13, 10), jnp.float32)  # HW = 130
    out2 = jax.block_until_ready(pixelwise_forward(x2, params))
    ref2 = pixelwise_reference(x2, params)
    assert out2.shape == (1, C4, 13, 10)
    assert jnp.allclose(out2, ref2, atol=5e-2, rtol=5e-2), "mismatch vs reference (case 2)"

    print("KERNEL_OK")
</pallas_src>

<mosaic_0001>
module attributes {stable_mosaic.version = 11 : i64} {
  func.func @pixelwise_kernel(%arg0: i32, %arg1: i32, %arg2: memref<1x103x256xf32, #tpu.memory_space<vmem>>, %arg3: memref<30x103xbf16, #tpu.memory_space<vmem>>, %arg4: memref<30x1xf32, #tpu.memory_space<vmem>>, %arg5: memref<62x30xbf16, #tpu.memory_space<vmem>>, %arg6: memref<15x1xf32, #tpu.memory_space<vmem>>, %arg7: memref<46x15xbf16, #tpu.memory_space<vmem>>, %arg8: memref<15x1xf32, #tpu.memory_space<vmem>>, %arg9: memref<30x15xbf16, #tpu.memory_space<vmem>>, %arg10: memref<30x1xf32, #tpu.memory_space<vmem>>, %arg11: memref<1x30x256xf32, #tpu.memory_space<vmem>>) attributes {dimension_semantics = [#tpu.dimension_semantics<parallel>, #tpu.dimension_semantics<parallel>], iteration_bounds = array<i64: 2, 1>, scalar_prefetch = 0 : i64, scratch_operands = 0 : i64, tpu.core_type = #tpu.core_type<tc>, window_params = [{transform_indices = @transform_0, window_bounds = array<i64: 1, 103, 256>}, {pipeline_mode = #tpu.pipeline_mode<synchronous>, transform_indices = @transform_1, window_bounds = array<i64: 30, 103>}, {pipeline_mode = #tpu.pipeline_mode<synchronous>, transform_indices = @transform_2, window_bounds = array<i64: 30, 1>}, {pipeline_mode = #tpu.pipeline_mode<synchronous>, transform_indices = @transform_3, window_bounds = array<i64: 62, 30>}, {pipeline_mode = #tpu.pipeline_mode<synchronous>, transform_indices = @transform_4, window_bounds = array<i64: 15, 1>}, {pipeline_mode = #tpu.pipeline_mode<synchronous>, transform_indices = @transform_5, window_bounds = array<i64: 46, 15>}, {pipeline_mode = #tpu.pipeline_mode<synchronous>, transform_indices = @transform_6, window_bounds = array<i64: 15, 1>}, {pipeline_mode = #tpu.pipeline_mode<synchronous>, transform_indices = @transform_7, window_bounds = array<i64: 30, 15>}, {pipeline_mode = #tpu.pipeline_mode<synchronous>, transform_indices = @transform_8, window_bounds = array<i64: 30, 1>}, {transform_indices = @transform_9, window_bounds = array<i64: 1, 30, 256>}]} {
    %c0 = arith.constant 0 : index
    %c0_0 = arith.constant 0 : index
    %c0_1 = arith.constant 0 : index
    %0 = vector.load %arg2[%c0, %c0_0, %c0_1] : memref<1x103x256xf32, #tpu.memory_space<vmem>>, vector<1x103x256xf32>
    %1 = vector.shape_cast %0 : vector<1x103x256xf32> to vector<103x256xf32>
    %2 = arith.truncf %1 : vector<103x256xf32> to vector<103x256xbf16>
    %c0_2 = arith.constant 0 : index
    %c0_3 = arith.constant 0 : index
    %3 = vector.load %arg3[%c0_2, %c0_3] : memref<30x103xbf16, #tpu.memory_space<vmem>>, vector<30x103xbf16>
    %cst = arith.constant dense<0.000000e+00> : vector<30x256xf32>
    %4 = tpu.matmul %3, %2, %cst {dimension_numbers = #tpu.dot_dimension_numbers<[1], [0], [0], [1], [0, 0, 1, 1], [], []>} : vector<30x103xbf16>, vector<103x256xbf16>, vector<30x256xf32> -> vector<30x256xf32>
    %c0_4 = arith.constant 0 : index
    %c0_5 = arith.constant 0 : index
    %5 = vector.load %arg4[%c0_4, %c0_5] : memref<30x1xf32, #tpu.memory_space<vmem>>, vector<30x1xf32>
    %6 = vector.broadcast %5 : vector<30x1xf32> to vector<30x256xf32>
    %7 = arith.addf %4, %6 : vector<30x256xf32>
    %cst_6 = arith.constant 0.000000e+00 : f32
    %8 = vector.broadcast %cst_6 : f32 to vector<30x256xf32>
    %9 = arith.cmpf ogt, %7, %8 : vector<30x256xf32>
    %cst_7 = arith.constant 0.00999999977 : f32
    %10 = vector.broadcast %cst_7 : f32 to vector<30x256xf32>
    %11 = arith.mulf %10, %7 : vector<30x256xf32>
    %12 = arith.select %9, %7, %11 : vector<30x256xi1>, vector<30x256xf32>
    %13 = arith.truncf %12 : vector<30x256xf32> to vector<30x256xbf16>
    %c0_8 = arith.constant 0 : index
    %c0_9 = arith.constant 0 : index
    %14 = vector.load %arg5[%c0_8, %c0_9] : memref<62x30xbf16, #tpu.memory_space<vmem>>, vector<62x30xbf16>
    %cst_10 = arith.constant dense<0.000000e+00> : vector<62x256xf32>
    %15 = tpu.matmul %14, %13, %cst_10 {dimension_numbers = #tpu.dot_dimension_numbers<[1], [0], [0], [1], [0, 0, 1, 1], [], []>} : vector<62x30xbf16>, vector<30x256xbf16>, vector<62x256xf32> -> vector<62x256xf32>
    %16 = vector.extract_strided_slice %15 {offsets = [0, 0], sizes = [15, 256], strides = [1, 1]} : vector<62x256xf32> to vector<15x256xf32>
    %c0_11 = arith.constant 0 : index
    %c0_12 = arith.constant 0 : index
    %17 = vector.load %arg6[%c0_11, %c0_12] : memref<15x1xf32, #tpu.memory_space<vmem>>, vector<15x1xf32>
    %18 = vector.broadcast %17 : vector<15x1xf32> to vector<15x256xf32>
    %19 = arith.addf %16, %18 : vector<15x256xf32>
    %cst_13 = arith.constant 0.000000e+00 : f32
    %20 = vector.broadcast %cst_13 : f32 to vector<15x256xf32>
    %21 = arith.cmpf ogt, %19, %20 : vector<15x256xf32>
    %cst_14 = arith.constant 0.00999999977 : f32
    %22 = vector.broadcast %cst_14 : f32 to vector<15x256xf32>
    %23 = arith.mulf %22, %19 : vector<15x256xf32>
    %24 = arith.select %21, %19, %23 : vector<15x256xi1>, vector<15x256xf32>
    %25 = arith.truncf %24 : vector<15x256xf32> to vector<15x256xbf16>
    %c0_15 = arith.constant 0 : index
    %c0_16 = arith.constant 0 : index
    %26 = vector.load %arg7[%c0_15, %c0_16] : memref<46x15xbf16, #tpu.memory_space<vmem>>, vector<46x15xbf16>
    %cst_17 = arith.constant dense<0.000000e+00> : vector<46x256xf32>
    %27 = tpu.matmul %26, %25, %cst_17 {dimension_numbers = #tpu.dot_dimension_numbers<[1], [0], [0], [1], [0, 0, 1, 1], [], []>} : vector<46x15xbf16>, vector<15x256xbf16>, vector<46x256xf32> -> vector<46x256xf32>
    %28 = vector.extract_strided_slice %15 {offsets = [16, 0], sizes = [15, 256], strides = [1, 1]} : vector<62x256xf32> to vector<15x256xf32>
    %29 = vector.extract_strided_slice %27 {offsets = [0, 0], sizes = [15, 256], strides = [1, 1]} : vector<46x256xf32> to vector<15x256xf32>
    %30 = arith.addf %28, %29 : vector<15x256xf32>
    %c0_18 = arith.constant 0 : index
    %c0_19 = arith.constant 0 : index
    %31 = vector.load %arg8[%c0_18, %c0_19] : memref<15x1xf32, #tpu.memory_space<vmem>>, vector<15x1xf32>
    %32 = vector.broadcast %31 : vector<15x1xf32> to vector<15x256xf32>
    %33 = arith.addf %30, %32 : vector<15x256xf32>
    %cst_20 = arith.constant 0.000000e+00 : f32
    %34 = vector.broadcast %cst_20 : f32 to vector<15x256xf32>
    %35 = arith.cmpf ogt, %33, %34 : vector<15x256xf32>
    %cst_21 = arith.constant 0.00999999977 : f32
    %36 = vector.broadcast %cst_21 : f32 to vector<15x256xf32>
    %37 = arith.mulf %36, %33 : vector<15x256xf32>
    %38 = arith.select %35, %33, %37 : vector<15x256xi1>, vector<15x256xf32>
    %39 = arith.truncf %38 : vector<15x256xf32> to vector<15x256xbf16>
    %c0_22 = arith.constant 0 : index
    %c0_23 = arith.constant 0 : index
    %40 = vector.load %arg9[%c0_22, %c0_23] : memref<30x15xbf16, #tpu.memory_space<vmem>>, vector<30x15xbf16>
    %cst_24 = arith.constant dense<0.000000e+00> : vector<30x256xf32>
    %41 = tpu.matmul %40, %39, %cst_24 {dimension_numbers = #tpu.dot_dimension_numbers<[1], [0], [0], [1], [0, 0, 1, 1], [], []>} : vector<30x15xbf16>, vector<15x256xbf16>, vector<30x256xf32> -> vector<30x256xf32>
    %42 = vector.extract_strided_slice %15 {offsets = [32, 0], sizes = [30, 256], strides = [1, 1]} : vector<62x256xf32> to vector<30x256xf32>
    %43 = vector.extract_strided_slice %27 {offsets = [16, 0], sizes = [30, 256], strides = [1, 1]} : vector<46x256xf32> to vector<30x256xf32>
    %44 = arith.addf %42, %43 : vector<30x256xf32>
    %45 = arith.addf %44, %41 : vector<30x256xf32>
    %c0_25 = arith.constant 0 : index
    %c0_26 = arith.constant 0 : index
    %46 = vector.load %arg10[%c0_25, %c0_26] : memref<30x1xf32, #tpu.memory_space<vmem>>, vector<30x1xf32>
    %47 = vector.broadcast %46 : vector<30x1xf32> to vector<30x256xf32>
    %48 = arith.addf %45, %47 : vector<30x256xf32>
    %c0_27 = arith.constant 0 : index
    %c0_28 = arith.constant 0 : index
    %c0_29 = arith.constant 0 : index
    %49 = vector.load %arg11[%c0_27, %c0_28, %c0_29] : memref<1x30x256xf32, #tpu.memory_space<vmem>>, vector<1x30x256xf32>
    %50 = vector.shape_cast %49 : vector<1x30x256xf32> to vector<30x256xf32>
    %51 = vector.shape_cast %48 : vector<30x256xf32> to vector<1x30x256xf32>
    tpu.vector_store %arg11[%c0_27, %c0_28, %c0_29], %51 {strides = array<i32>} : memref<1x30x256xf32, #tpu.memory_space<vmem>>, vector<1x30x256xf32>,
    return
  }
  func.func @transform_0(%arg0: i32, %arg1: i32) -> (i32, i32, i32) {
    %c0_i32 = arith.constant 0 : i32
    %c0_i32_0 = arith.constant 0 : i32
    return %arg0, %c0_i32, %arg1 : i32, i32, i32
  }
  func.func @transform_1(%arg0: i32, %arg1: i32) -> (i32, i32) {
    %c0_i32 = arith.constant 0 : i32
    %c0_i32_0 = arith.constant 0 : i32
    %c0_i32_1 = arith.constant 0 : i32
    return %c0_i32, %c0_i32_0 : i32, i32
  }
  func.func @transform_2(%arg0: i32, %arg1: i32) -> (i32, i32) {
    %c0_i32 = arith.constant 0 : i32
    %c0_i32_0 = arith.constant 0 : i32
    %c0_i32_1 = arith.constant 0 : i32
    return %c0_i32, %c0_i32_0 : i32, i32
  }
  func.func @transform_3(%arg0: i32, %arg1: i32) -> (i32, i32) {
    %c0_i32 = arith.constant 0 : i32
    %c0_i32_0 = arith.constant 0 : i32
    %c0_i32_1 = arith.constant 0 : i32
    return %c0_i32, %c0_i32_0 : i32, i32
  }
  func.func @transform_4(%arg0: i32, %arg1: i32) -> (i32, i32) {
    %c0_i32 = arith.constant 0 : i32
    %c0_i32_0 = arith.constant 0 : i32
    %c0_i32_1 = arith.constant 0 : i32
    return %c0_i32, %c0_i32_0 : i32, i32
  }
  func.func @transform_5(%arg0: i32, %arg1: i32) -> (i32, i32) {
    %c0_i32 = arith.constant 0 : i32
    %c0_i32_0 = arith.constant 0 : i32
    %c0_i32_1 = arith.constant 0 : i32
    return %c0_i32, %c0_i32_0 : i32, i32
  }
  func.func @transform_6(%arg0: i32, %arg1: i32) -> (i32, i32) {
    %c0_i32 = arith.constant 0 : i32
    %c0_i32_0 = arith.constant 0 : i32
    %c0_i32_1 = arith.constant 0 : i32
    return %c0_i32, %c0_i32_0 : i32, i32
  }
  func.func @transform_7(%arg0: i32, %arg1: i32) -> (i32, i32) {
    %c0_i32 = arith.constant 0 : i32
    %c0_i32_0 = arith.constant 0 : i32
    %c0_i32_1 = arith.constant 0 : i32
    return %c0_i32, %c0_i32_0 : i32, i32
  }
  func.func @transform_8(%arg0: i32, %arg1: i32) -> (i32, i32) {
    %c0_i32 = arith.constant 0 : i32
    %c0_i32_0 = arith.constant 0 : i32
    %c0_i32_1 = arith.constant 0 : i32
    return %c0_i32, %c0_i32_0 : i32, i32
  }
  func.func @transform_9(%arg0: i32, %arg1: i32) -> (i32, i32, i32) {
    %c0_i32 = arith.constant 0 : i32
    %c0_i32_0 = arith.constant 0 : i32
    return %arg0, %c0_i32, %arg1 : i32, i32, i32
  }
}

</mosaic_0001>

<llo_original>
// kernel: tpu_custom_call.1
$region0: #{tpu_custom_call.1}
  #allocation0 [shape = 'u32[]', space=smem, size = 0x4, offset = 0x4, fixed_abs, tag = 'smem constant byte address 0x4 - core index']
  #allocation1 [shape = 'u32[72,128]{1,0:T(1,128)}', space=vmem, size = 0x9000, scoped, tag = 'internal scratch']
  %s0 = inlined_call_operand.vmem [shape: f32[2,103,256], index: 0, kind: input, shape index: {}]
  %s1 = inlined_call_operand.vmem [shape: bf16[30,103], index: 1, kind: input, shape index: {}]
  %s2 = inlined_call_operand.vmem [shape: f32[30,1], index: 2, kind: input, shape index: {}]
  %s3 = inlined_call_operand.vmem [shape: bf16[62,30], index: 3, kind: input, shape index: {}]
  %s4 = inlined_call_operand.vmem [shape: f32[15,1], index: 4, kind: input, shape index: {}]
  %s5 = inlined_call_operand.vmem [shape: bf16[46,15], index: 5, kind: input, shape index: {}]
  %s6 = inlined_call_operand.vmem [shape: f32[15,1], index: 6, kind: input, shape index: {}]
  %s7 = inlined_call_operand.vmem [shape: bf16[30,15], index: 7, kind: input, shape index: {}]
  %s8 = inlined_call_operand.vmem [shape: f32[30,1], index: 8, kind: input, shape index: {}]
  %s9 = inlined_call_operand.vmem [shape: f32[2,30,256], index: 9, kind: output, shape index: {}]
  %s10 = sld [smem:[#allocation0]]
  $region69: #{tpu_custom_call.1} parent=0
    _
  %s12 = ssub.s32 1, %s10
  %s13 = scalar_select 0, %s12, %s10
  loop: start=0, step=1, limit=4
  $region2: #{tpu_custom_call.1} parent=0 // loop_pre_header
    _
  $region3: #{tpu_custom_call.1} parent=0 // loop_header
    %s15 = sphi 0, %s19
    %p16 = scmp.ge.s32.totalorder %s15, 4
    %s22 = sphi 0, %s34
    %s23 = sphi 0, %s30
    %s24 = sphi 0, %s22
    %s25 = sphi 0, %s23
    %s26 = sphi 0, %s24
    %s27 = sphi 0, %s25
    %s39 = sphi 0, %s41
    %s42 = sphi 0, %s39
    %s43 = sphi 0, %s42
    %s59 = sphi 0, %s43
    %s63 = sphi 0, %s63
    %s65 = sphi 0, %s63
    %s66 = sphi 0, %s65
    %s80 = sphi 0, %s66
    %s84 = sphi 0, %s84
    %s86 = sphi 0, %s84
    %s87 = sphi 0, %s86
    %s101 = sphi 0, %s87
    %s105 = sphi 0, %s105
    %s107 = sphi 0, %s105
    %s108 = sphi 0, %s107
    %s122 = sphi 0, %s108
    %s126 = sphi 0, %s126
    %s128 = sphi 0, %s126
    %s129 = sphi 0, %s128
    %s143 = sphi 0, %s129
    %s147 = sphi 0, %s147
    %s149 = sphi 0, %s147
    %s150 = sphi 0, %s149
    %s164 = sphi 0, %s150
    %s168 = sphi 0, %s168
    %s170 = sphi 0, %s168
    %s171 = sphi 0, %s170
    %s185 = sphi 0, %s171
    %s189 = sphi 0, %s189
    %s191 = sphi 0, %s189
    %s192 = sphi 0, %s191
    %s206 = sphi 0, %s192
    %s210 = sphi 0, %s210
    %s212 = sphi 0, %s210
    %s213 = sphi 0, %s212
    %s227 = sphi 0, %s213
    %s235 = sphi 0, %s237
    %s238 = sphi 0, %s235
    %s239 = sphi 0, %s238
    %s255 = sphi 0, %s239
  $region4: #{tpu_custom_call.1} parent=0 // loop_header_branch
    %18 = sbr.rel (%p16) target = $region8
  $region5: #{tpu_custom_call.1} parent=0 // loop_body
    %s20 = ssub.s32 %s15, 1
    %s21 = ssub.s32 %s15, 2
    %s28 = sadd.s32 1, %s23
    %p29 = scmp.ge.s32.totalorder %s28, 1
    %s30 = scalar_select %p29, 0, %s28
    %s31 = sadd.s32 1, %s22
    %s32 = scalar_select %p29, %s31, %s22
    %p33 = scmp.ge.s32.totalorder %s32, 2
    %s34 = scalar_select %p33, 0, %s32
    %s35 = ssub.s32 %s22, %s34
    %s36 = ssub.s32 %s23, %s30
    %s37 = sor.u32 %s35, %s36
    %p38 = scmp.eq.s32.totalorder %s37, 0
    %s40 = sadd.s32 %s39, 1
    %s41 = scalar_select %p38, %s39, %s40
    %p44 = pneg %p38
    %p45 = scmp.eq.s32.totalorder %s15, 1
    %p46 = por %p44, %p45
    %p47 = scmp.ne.s32.totalorder %s39, %s42
    %p48 = scmp.eq.s32.totalorder %s15, 0
    %p49 = por %p47, %p48
    %p50 = scmp.ne.s32.totalorder %s39, %s42
    %p51 = scmp.eq.s32.totalorder %s20, 1
    %p52 = por %p50, %p51
    %p53 = scmp.ne.s32.totalorder %s42, %s43
    %p54 = scmp.eq.s32.totalorder %s20, 0
    %p55 = por %p53, %p54
    %p56 = scmp.ne.s32.totalorder %s42, %s43
    %p57 = scmp.eq.s32.totalorder %s21, 1
    %p58 = por %p56, %p57
    %p60 = scmp.ne.s32.totalorder %s43, %s59
    %p61 = scmp.eq.s32.totalorder %s21, 0
    %p62 = por %p60, %p61
    %s64 = sadd.s32 %s63, 1
    %p67 = scmp.eq.s32.totalorder %s15, 1
    %p68 = scmp.ne.s32.totalorder %s63, %s65
    %p69 = scmp.eq.s32.totalorder %s15, 0
    %p70 = por %p68, %p69
    %p71 = scmp.ne.s32.totalorder %s63, %s65
    %p72 = scmp.eq.s32.totalorder %s20, 1
    %p73 = por %p71, %p72
    %p74 = scmp.ne.s32.totalorder %s65, %s66
    %p75 = scmp.eq.s32.totalorder %s20, 0
    %p76 = por %p74, %p75
    %p77 = scmp.ne.s32.totalorder %s65, %s66
    %p78 = scmp.eq.s32.totalorder %s21, 1
    %p79 = por %p77, %p78
    %p81 = scmp.ne.s32.totalorder %s66, %s80
    %p82 = scmp.eq.s32.totalorder %s21, 0
    %p83 = por %p81, %p82
    %s85 = sadd.s32 %s84, 1
    %p88 = scmp.eq.s32.totalorder %s15, 1
    %p89 = scmp.ne.s32.totalorder %s84, %s86
    %p90 = scmp.eq.s32.totalorder %s15, 0
    %p91 = por %p89, %p90
    %p92 = scmp.ne.s32.totalorder %s84, %s86
    %p93 = scmp.eq.s32.totalorder %s20, 1
    %p94 = por %p92, %p93
    %p95 = scmp.ne.s32.totalorder %s86, %s87
    %p96 = scmp.eq.s32.totalorder %s20, 0
    %p97 = por %p95, %p96
    %p98 = scmp.ne.s32.totalorder %s86, %s87
    %p99 = scmp.eq.s32.totalorder %s21, 1
    %p100 = por %p98, %p99
    %p102 = scmp.ne.s32.totalorder %s87, %s101
    %p103 = scmp.eq.s32.totalorder %s21, 0
    %p104 = por %p102, %p103
    %s106 = sadd.s32 %s105, 1
    %p109 = scmp.eq.s32.totalorder %s15, 1
    %p110 = scmp.ne.s32.totalorder %s105, %s107
    %p111 = scmp.eq.s32.totalorder %s15, 0
    %p112 = por %p110, %p111
    %p113 = scmp.ne.s32.totalorder %s105, %s107
    %p114 = scmp.eq.s32.totalorder %s20, 1
    %p115 = por %p113, %p114
    %p116 = scmp.ne.s32.totalorder %s107, %s108
    %p117 = scmp.eq.s32.totalorder %s20, 0
    %p118 = por %p116, %p117
    %p119 = scmp.ne.s32.totalorder %s107, %s108
    %p120 = scmp.eq.s32.totalorder %s21, 1
    %p121 = por %p119, %p120
    %p123 = scmp.ne.s32.totalorder %s108, %s122
    %p124 = scmp.eq.s32.totalorder %s21, 0
    %p125 = por %p123, %p124
    %s127 = sadd.s32 %s126, 1
    %p130 = scmp.eq.s32.totalorder %s15, 1
    %p131 = scmp.ne.s32.totalorder %s126, %s128
    %p132 = scmp.eq.s32.totalorder %s15, 0
    %p133 = por %p131, %p132
    %p134 = scmp.ne.s32.totalorder %s126, %s128
    %p135 = scmp.eq.s32.totalorder %s20, 1
    %p136 = por %p134, %p135
    %p137 = scmp.ne.s32.totalorder %s128, %s129
    %p138 = scmp.eq.s32.totalorder %s20, 0
    %p139 = por %p137, %p138
    %p140 = scmp.ne.s32.totalorder %s128, %s129
    %p141 = scmp.eq.s32.totalorder %s21, 1
    %p142 = por %p140, %p141
    %p144 = scmp.ne.s32.totalorder %s129, %s143
    %p145 = scmp.eq.s32.totalorder %s21, 0
    %p146 = por %p144, %p145
    %s148 = sadd.s32 %s147, 1
    %p151 = scmp.eq.s32.totalorder %s15, 1
    %p152 = scmp.ne.s32.totalorder %s147, %s149
    %p153 = scmp.eq.s32.totalorder %s15, 0
    %p154 = por %p152, %p153
    %p155 = scmp.ne.s32.totalorder %s147, %s149
    %p156 = scmp.eq.s32.totalorder %s20, 1
    %p157 = por %p155, %p156
    %p158 = scmp.ne.s32.totalorder %s149, %s150
    %p159 = scmp.eq.s32.totalorder %s20, 0
    %p160 = por %p158, %p159
    %p161 = scmp.ne.s32.totalorder %s149, %s150
    %p162 = scmp.eq.s32.totalorder %s21, 1
    %p163 = por %p161, %p162
    %p165 = scmp.ne.s32.totalorder %s150, %s164
    %p166 = scmp.eq.s32.totalorder %s21, 0
    %p167 = por %p165, %p166
    %s169 = sadd.s32 %s168, 1
    %p172 = scmp.eq.s32.totalorder %s15, 1
    %p173 = scmp.ne.s32.totalorder %s168, %s170
    %p174 = scmp.eq.s32.totalorder %s15, 0
    %p175 = por %p173, %p174
    %p176 = scmp.ne.s32.totalorder %s168, %s170
    %p177 = scmp.eq.s32.totalorder %s20, 1
    %p178 = por %p176, %p177
    %p179 = scmp.ne.s32.totalorder %s170, %s171
    %p180 = scmp.eq.s32.totalorder %s20, 0
    %p181 = por %p179, %p180
    %p182 = scmp.ne.s32.totalorder %s170, %s171
    %p183 = scmp.eq.s32.totalorder %s21, 1
    %p184 = por %p182, %p183
    %p186 = scmp.ne.s32.totalorder %s171, %s185
    %p187 = scmp.eq.s32.totalorder %s21, 0
    %p188 = por %p186, %p187
    %s190 = sadd.s32 %s189, 1
    %p193 = scmp.eq.s32.totalorder %s15, 1
    %p194 = scmp.ne.s32.totalorder %s189, %s191
    %p195 = scmp.eq.s32.totalorder %s15, 0
    %p196 = por %p194, %p195
    %p197 = scmp.ne.s32.totalorder %s189, %s191
    %p198 = scmp.eq.s32.totalorder %s20, 1
    %p199 = por %p197, %p198
    %p200 = scmp.ne.s32.totalorder %s191, %s192
    %p201 = scmp.eq.s32.totalorder %s20, 0
    %p202 = por %p200, %p201
    %p203 = scmp.ne.s32.totalorder %s191, %s192
    %p204 = scmp.eq.s32.totalorder %s21, 1
    %p205 = por %p203, %p204
    %p207 = scmp.ne.s32.totalorder %s192, %s206
    %p208 = scmp.eq.s32.totalorder %s21, 0
    %p209 = por %p207, %p208
    %s211 = sadd.s32 %s210, 1
    %p214 = scmp.eq.s32.totalorder %s15, 1
    %p215 = scmp.ne.s32.totalorder %s210, %s212
    %p216 = scmp.eq.s32.totalorder %s15, 0
    %p217 = por %p215, %p216
    %p218 = scmp.ne.s32.totalorder %s210, %s212
    %p219 = scmp.eq.s32.totalorder %s20, 1
    %p220 = por %p218, %p219
    %p221 = scmp.ne.s32.totalorder %s212, %s213
    %p222 = scmp.eq.s32.totalorder %s20, 0
    %p223 = por %p221, %p222
    %p224 = scmp.ne.s32.totalorder %s212, %s213
    %p225 = scmp.eq.s32.totalorder %s21, 1
    %p226 = por %p224, %p225
    %p228 = scmp.ne.s32.totalorder %s213, %s227
    %p229 = scmp.eq.s32.totalorder %s21, 0
    %p230 = por %p228, %p229
    %s231 = ssub.s32 %s22, %s34
    %s232 = ssub.s32 %s23, %s30
    %s233 = sor.u32 %s231, %s232
    %p234 = scmp.eq.s32.totalorder %s233, 0
    %s236 = sadd.s32 %s235, 1
    %s237 = scalar_select %p234, %s235, %s236
    %p240 = pneg %p234
    %p241 = scmp.eq.s32.totalorder %s15, 1
    %p242 = por %p240, %p241
    %p243 = scmp.ne.s32.totalorder %s235, %s238
    %p244 = scmp.eq.s32.totalorder %s15, 0
    %p245 = por %p243, %p244
    %p246 = scmp.ne.s32.totalorder %s235, %s238
    %p247 = scmp.eq.s32.totalorder %s20, 1
    %p248 = por %p246, %p247
    %p249 = scmp.ne.s32.totalorder %s238, %s239
    %p250 = scmp.eq.s32.totalorder %s20, 0
    %p251 = por %p249, %p250
    %p252 = scmp.ne.s32.totalorder %s238, %s239
    %p253 = scmp.eq.s32.totalorder %s21, 1
    %p254 = por %p252, %p253
    %p256 = scmp.ne.s32.totalorder %s239, %s255
    %p257 = scmp.eq.s32.totalorder %s21, 0
    %p258 = por %p256, %p257
    %p259 = scmp.le.s32.totalorder 1, %s15
    %p260 = scmp.lt.s32.totalorder %s15, 3
    %p261 = pnand %p259, %p260
    %p262 = pneg %p261
    // Predicated region
    $region9: #{tpu_custom_call.1} parent=5 // pred_check
      _
    $region10: #{tpu_custom_call.1} parent=5 // pred_check_branch
      %264 = sbr.rel (%p261) target = $region12
    $region11: #{tpu_custom_call.1} parent=5 // pred_region
      %s265 = ssub.s32 %s15, 1
      // Predicated region
      $region13: #{tpu_custom_call.1} parent=11 // pred_check
        %p266 = pneg %p76
      $region14: #{tpu_custom_call.1} parent=11 // pred_check_branch
        %268 = sbr.rel (%p266) target = $region16
      $region15: #{tpu_custom_call.1} parent=11 // pred_region
        _
      $region16: #{tpu_custom_call.1} parent=11 // pred_fallthru
        _
      // Predicated region
      $region17: #{tpu_custom_call.1} parent=11 // pred_check
        %p269 = pneg %p97
      $region18: #{tpu_custom_call.1} parent=11 // pred_check_branch
        %271 = sbr.rel (%p269) target = $region20
      $region19: #{tpu_custom_call.1} parent=11 // pred_region
        _
      $region20: #{tpu_custom_call.1} parent=11 // pred_fallthru
        _
      // Predicated region
      $region21: #{tpu_custom_call.1} parent=11 // pred_check
        %p272 = pneg %p118
      $region22: #{tpu_custom_call.1} parent=11 // pred_check_branch
        %274 = sbr.rel (%p272) target = $region24
      $region23: #{tpu_custom_call.1} parent=11 // pred_region
        _
      $region24: #{tpu_custom_call.1} parent=11 // pred_fallthru
        _
      // Predicated region
      $region25: #{tpu_custom_call.1} parent=11 // pred_check
        %p275 = pneg %p139
      $region26: #{tpu_custom_call.1} parent=11 // pred_check_branch
        %277 = sbr.rel (%p275) target = $region28
      $region27: #{tpu_custom_call.1} parent=11 // pred_region
        _
      $region28: #{tpu_custom_call.1} parent=11 // pred_fallthru
        _
      // Predicated region
      $region29: #{tpu_custom_call.1} parent=11 // pred_check
        %p278 = pneg %p160
      $region30: #{tpu_custom_call.1} parent=11 // pred_check_branch
        %280 = sbr.rel (%p278) target = $region32
      $region31: #{tpu_custom_call.1} parent=11 // pred_region
        _
      $region32: #{tpu_custom_call.1} parent=11 // pred_fallthru
        _
      // Predicated region
      $region33: #{tpu_custom_call.1} parent=11 // pred_check
        %p281 = pneg %p181
      $region34: #{tpu_custom_call.1} parent=11 // pred_check_branch
        %283 = sbr.rel (%p281) target = $region36
      $region35: #{tpu_custom_call.1} parent=11 // pred_region
        _
      $region36: #{tpu_custom_call.1} parent=11 // pred_fallthru
        _
      // Predicated region
      $region37: #{tpu_custom_call.1} parent=11 // pred_check
        %p284 = pneg %p202
      $region38: #{tpu_custom_call.1} parent=11 // pred_check_branch
        %286 = sbr.rel (%p284) target = $region40
      $region39: #{tpu_custom_call.1} parent=11 // pred_region
        _
      $region40: #{tpu_custom_call.1} parent=11 // pred_fallthru
        _
      // Predicated region
      $region41: #{tpu_custom_call.1} parent=11 // pred_check
        %p287 = pneg %p223
      $region42: #{tpu_custom_call.1} parent=11 // pred_check_branch
        %289 = sbr.rel (%p287) target = $region44
      $region43: #{tpu_custom_call.1} parent=11 // pred_region
        _
      $region44: #{tpu_custom_call.1} parent=11 // pred_fallthru
        _
    $region12: #{tpu_custom_call.1} parent=5 // pred_fallthru
      _
    %p290 = scmp.lt.s32.totalorder %s15, 2
    // Predicated region
    $region45: #{tpu_custom_call.1} parent=5 // pred_check
      %p291 = pneg %p290
    $region46: #{tpu_custom_call.1} parent=5 // pred_check_branch
      %293 = sbr.rel (%p291) target = $region48
    $region47: #{tpu_custom_call.1} parent=5 // pred_region
      // Predicated region
      $region49: #{tpu_custom_call.1} parent=47 // pred_check
        %p294 = pneg %p49
      $region50: #{tpu_custom_call.1} parent=47 // pred_check_branch
        %296 = sbr.rel (%p294) target = $region52
      $region51: #{tpu_custom_call.1} parent=47 // pred_region
        %s297 = smul.u32 2, %s23
        %p298 = scmp.lt.s32.totalorder %s22, 1
        %s299 = scalar_select %p298, %s22, 1
        %p300 = scmp.lt.s32.totalorder %s297, 1
        %s301 = scalar_select %p300, %s297, 1
        %s302 = smul.addr %s299, 26
        %s303 = sadd.s32 %s301, %s302
        %s304 = smul.addr %s303, 8
        %s305 = scalar_lea.vmem %s0, %s304
        %s306 = smul.u32 2, %s23
      $region52: #{tpu_custom_call.1} parent=47 // pred_fallthru
        _
    $region48: #{tpu_custom_call.1} parent=5 // pred_fallthru
      _
    %p307 = scmp.le.s32.totalorder 1, %s15
    %p308 = scmp.lt.s32.totalorder %s15, 3
    %p309 = pnand %p307, %p308
    %p310 = pneg %p309
    // Predicated region
    $region53: #{tpu_custom_call.1} parent=5 // pred_check
      _
    $region54: #{tpu_custom_call.1} parent=5 // pred_check_branch
      %312 = sbr.rel (%p309) target = $region56
    $region55: #{tpu_custom_call.1} parent=5 // pred_region
      %s313 = ssub.s32 %s15, 1
      %s314 = smul.u32 2, %s25
      %p315 = scmp.lt.s32.totalorder %s24, 1
      %s316 = scalar_select %p315, %s24, 1
      %p317 = scmp.lt.s32.totalorder %s314, 1
      %s318 = scalar_select %p317, %s314, 1
      %s319 = smul.addr %s316, 26
      %s320 = sadd.s32 %s318, %s319
      %s321 = smul.addr %s320, 8
      %s322 = scalar_lea.vmem %s0, %s321
      %p323 = pneg %p55
      %p324 = pneg %p52
      %p325 = pneg %p76
      %p326 = pneg %p73
      %p327 = pneg %p97
      %p328 = pneg %p94
      %p329 = pneg %p118
      %p330 = pneg %p115
      %p331 = pneg %p139
      %p332 = pneg %p136
      %p333 = pneg %p160
      %p334 = pneg %p157
      %p335 = pneg %p181
      %p336 = pneg %p178
      %p337 = pneg %p202
      %p338 = pneg %p199
      %p339 = pneg %p223
      %p340 = pneg %p220
      %p341 = pneg %p251
      %p342 = pneg %p248
      %s343 = smul.u32 2, %s25
      %p344 = scmp.lt.s32.totalorder %s24, 1
      %s345 = scalar_select %p344, %s24, 1
      %p346 = scmp.lt.s32.totalorder %s343, 1
      %s347 = scalar_select %p346, %s343, 1
      %s348 = smul.addr %s345, 8
      %s349 = sadd.s32 %s347, %s348
      %s350 = smul.addr %s349, 8
      %s351 = scalar_lea.vmem %s9, %s350
      %s352 = smul.u32 2, %s25
      %p353 = scmp.lt.s32.totalorder %s24, 1
      %s354 = scalar_select %p353, %s24, 1
      %p355 = scmp.lt.s32.totalorder %s352, 1
      %s356 = scalar_select %p355, %s352, 1
      %s357 = smul.addr %s354, 26
      %s358 = sadd.s32 %s356, %s357
      %s359 = smul.addr %s358, 8
      %s360 = scalar_lea.vmem %s0, %s359
      %s361 = smul.u32 2, %s25
      %s362 = smul.u32 2, %s25
      %p363 = scmp.lt.s32.totalorder %s24, 1
      %s364 = scalar_select %p363, %s24, 1
      %p365 = scmp.lt.s32.totalorder %s362, 1
      %s366 = scalar_select %p365, %s362, 1
      %s367 = smul.addr %s364, 8
      %s368 = sadd.s32 %s366, %s367
      %s369 = smul.addr %s368, 8
      %s370 = scalar_lea.vmem %s9, %s369
      %s371 = smul.u32 2, %s25
      %v373 = vld [vmem:[%s360] sm:$0xff]
      %v374 = vld [vmem:[%s360 + $0x8] sm:$0xff]
      %v375 = vld [vmem:[%s360 + $0x10] sm:$0xff]
      %v376 = vld [vmem:[%s360 + $0x18] sm:$0xff]
      %v377 = vld [vmem:[%s360 + $0x20] sm:$0xff]
      %v378 = vld [vmem:[%s360 + $0x28] sm:$0xff]
      %v379 = vld [vmem:[%s360 + $0x30] sm:$0xff]
      %v380 = vld [vmem:[%s360 + $0x38] sm:$0xff]
      %v381 = vld [vmem:[%s360 + $0x40] sm:$0xff]
      %v382 = vld [vmem:[%s360 + $0x48] sm:$0xff]
      %v383 = vld [vmem:[%s360 + $0x50] sm:$0xff]
      %v384 = vld [vmem:[%s360 + $0x58] sm:$0xff]
      %v385 = vld [vmem:[%s360 + $0x60] sm:$0xff]
      %v386 = vld [vmem:[%s360 + $0x68] sm:$0xff]
      %v387 = vld [vmem:[%s360 + $0x70] sm:$0xff]
      %v388 = vld [vmem:[%s360 + $0x78] sm:$0xff]
      %v389 = vld [vmem:[%s360 + $0x80] sm:$0xff]
      %v390 = vld [vmem:[%s360 + $0x88] sm:$0xff]
      %v391 = vld [vmem:[%s360 + $0x90] sm:$0xff]
      %v392 = vld [vmem:[%s360 + $0x98] sm:$0xff]
      %v393 = vld [vmem:[%s360 + $0xa0] sm:$0xff]
      %v394 = vld [vmem:[%s360 + $0xa8] sm:$0xff]
      %v395 = vld [vmem:[%s360 + $0xb0] sm:$0xff]
      %v396 = vld [vmem:[%s360 + $0xb8] sm:$0xff]
      %v397 = vld [vmem:[%s360 + $0xc0] sm:$0x7f]
      %v398 = vld [vmem:[%s360 + $0xc8] sm:$0x7f]
      %v399 = vpack.c.bf16 %v375, %v373
      %v400 = vpack.c.bf16 %v376, %v374
      %v401 = vpack.c.bf16 %v379, %v377
      %v402 = vpack.c.bf16 %v380, %v378
      %v403 = vpack.c.bf16 %v383, %v381
      %v404 = vpack.c.bf16 %v384, %v382
      %v405 = vpack.c.bf16 %v387, %v385
      %v406 = vpack.c.bf16 %v388, %v386
      %v407 = vpack.c.bf16 %v391, %v389
      %v408 = vpack.c.bf16 %v392, %v390
      %v409 = vpack.c.bf16 %v395, %v393
      %v410 = vpack.c.bf16 %v396, %v394
      %v411 = vpack.c.bf16 %v397, %v397
      %v412 = vpack.c.bf16 %v398, %v398
      %v413 = vld [vmem:[%s1] sm:$0xf]
      %v414 = vld [vmem:[%s1 + $0x4] sm:$0xf]
      %v415 = vld [vmem:[%s1 + $0x8] sm:$0xf]
      %v416 = vld [vmem:[%s1 + $0xc] sm:$0x7]
      %v417 = vld [vmem:[%s2] sm:$0xff]
      %v418 = vld [vmem:[%s2 + $0x8] sm:$0xff]
      %v419 = vld [vmem:[%s2 + $0x10] sm:$0xff]
      %v420 = vld [vmem:[%s2 + $0x18] sm:$0x3f]
      %422 = vset.pattern.permute.xlu0 0
      %423 = vperm.xlu0 %422, %v417
      %v424 = vpop.permute.xlu0 %423
      %427 = vset.pattern.permute.xlu0 0
      %428 = vperm.xlu0 %427, %v418
      %v429 = vpop.permute.xlu0 %428
      %432 = vset.pattern.permute.xlu0 0
      %433 = vperm.xlu0 %432, %v419
      %v434 = vpop.permute.xlu0 %433
      %437 = vset.pattern.permute.xlu0 0
      %438 = vperm.xlu0 %437, %v420
      %v439 = vpop.permute.xlu0 %438
      %v445 = vunpack.c.l.b16 %v413
      %v446 = vunpack.c.l.b16 %v414
      %v447 = vunpack.c.l.b16 %v415
      %v448 = vunpack.c.l.b16 %v416
      %v449 = vpack.c.b16 %v446, %v445
      %v450 = vpack.c.b16 %v448, %v447
      %vm451 = vcmask 842752
      %v453 = vsel %vm451, %v449, 0
      %v456 = vsel %vm451, %v450, 0
      %vm458 = vcmask 1042432
      %vm459 = vcmask 1043456
      %v460 = vsel %vm458, 4294967295, 65535
      %v461 = vsel %vm459, %v460, 0
      %v463 = vand.u32 %v411, %v461
      %v466 = vand.u32 %v412, %v461
      %468 = vmatpush.bf16.msra.mxu0 0
      %469 = vmatpush.bf16.msra.mxu0 %v463
      %470 = vmatpush.bf16.msra.mxu0 %v409
      %471 = vmatpush.bf16.msra.mxu0 %v407
      %472 = vmatpush.bf16.msra.mxu0 %v405
      %473 = vmatpush.bf16.msra.mxu0 %v403
      %474 = vmatpush.bf16.msra.mxu0 %v401
      %475 = vmatpush.bf16.msra.mxu0 %v399
      %476 = vmatmul.bf16.gmra.mxu0 %v453
      %v477 = vpop.f32.mrf.mxu0
      %v478 = vadd.f32 %v424, %v477
      %v479 = vpop.f32.mrf.mxu0
      %v480 = vadd.f32 %v429, %v479
      %481 = vmatmul.bf16.gmra.mxu0 %v456
      %v482 = vpop.f32.mrf.mxu0
      %v483 = vadd.f32 %v434, %v482
      %v484 = vpop.f32.mrf.mxu0
      %v485 = vadd.f32 %v439, %v484
      %486 = vdwg.mxu0
      %487 = vmatpush.bf16.msra.mxu0 0
      %488 = vmatpush.bf16.msra.mxu0 %v466
      %489 = vmatpush.bf16.msra.mxu0 %v410
      %490 = vmatpush.bf16.msra.mxu0 %v408
      %491 = vmatpush.bf16.msra.mxu0 %v406
      %492 = vmatpush.bf16.msra.mxu0 %v404
      %493 = vmatpush.bf16.msra.mxu0 %v402
      %494 = vmatpush.bf16.msra.mxu0 %v400
      %495 = vmatmul.bf16.gmra.mxu0 %v453
      %v496 = vpop.f32.mrf.mxu0
      %v497 = vadd.f32 %v424, %v496
      %v498 = vpop.f32.mrf.mxu0
      %v499 = vadd.f32 %v429, %v498
      %500 = vmatmul.bf16.gmra.mxu0 %v456
      %v501 = vpop.f32.mrf.mxu0
      %v502 = vadd.f32 %v434, %v501
      %v503 = vpop.f32.mrf.mxu0
      %v504 = vadd.f32 %v439, %v503
      %505 = vdwg.mxu0
      %vm506 = vcmp.gt.f32.partialorder %v478, 0.0
      %vm507 = vcmp.gt.f32.partialorder %v497, 0.0
      %vm508 = vcmp.gt.f32.partialorder %v480, 0.0
      %vm509 = vcmp.gt.f32.partialorder %v499, 0.0
      %vm510 = vcmp.gt.f32.partialorder %v483, 0.0
      %vm511 = vcmp.gt.f32.partialorder %v502, 0.0
      %vm512 = vcmp.gt.f32.partialorder %v485, 0.0
      %vm513 = vcmp.gt.f32.partialorder %v504, 0.0
      %v514 = vmul.f32 %v478, 0.01
      %v515 = vmul.f32 %v497, 0.01
      %v516 = vmul.f32 %v480, 0.01
      %v517 = vmul.f32 %v499, 0.01
      %v518 = vmul.f32 %v483, 0.01
      %v519 = vmul.f32 %v502, 0.01
      %v520 = vmul.f32 %v485, 0.01
      %v521 = vmul.f32 %v504, 0.01
      %v522 = vsel %vm506, %v478, %v514
      %v523 = vsel %vm507, %v497, %v515
      %v524 = vsel %vm508, %v480, %v516
      %v525 = vsel %vm509, %v499, %v517
      %v526 = vsel %vm510, %v483, %v518
      %v527 = vsel %vm511, %v502, %v519
      %v528 = vsel %vm512, %v485, %v520
      %v529 = vsel %vm513, %v504, %v521
      %v530 = vpack.c.bf16 %v524, %v522
      %v531 = vpack.c.bf16 %v525, %v523
      %v532 = vpack.c.bf16 %v528, %v526
      %v533 = vpack.c.bf16 %v529, %v527
      %v534 = vld [vmem:[%s3] sm:$0xf]
      %v535 = vld [vmem:[%s3 + $0x4] sm:$0xf]
      %v536 = vld [vmem:[%s3 + $0x8] sm:$0xf]
      %v537 = vld [vmem:[%s3 + $0xc] sm:$0xf]
      %v538 = vld [vmem:[%s3 + $0x10] sm:$0xf]
      %v539 = vld [vmem:[%s3 + $0x14] sm:$0xf]
      %v540 = vld [vmem:[%s3 + $0x18] sm:$0xf]
      %v541 = vld [vmem:[%s3 + $0x1c] sm:$0x7]
      %v550 = vunpack.c.l.b16 %v534
      %v551 = vunpack.c.l.b16 %v535
      %v552 = vunpack.c.l.b16 %v536
      %v553 = vunpack.c.l.b16 %v537
      %v554 = vunpack.c.l.b16 %v538
      %v555 = vunpack.c.l.b16 %v539
      %v556 = vunpack.c.l.b16 %v540
      %v557 = vunpack.c.l.b16 %v541
      %v558 = vpack.c.b16 %v551, %v550
      %v559 = vpack.c.b16 %v553, %v552
      %v560 = vpack.c.b16 %v555, %v554
      %v561 = vpack.c.b16 %v557, %v556
      %vm562 = vcmask 244736
      %v564 = vsel %vm562, %v558, 0
      %v567 = vsel %vm562, %v559, 0
      %v570 = vsel %vm562, %v560, 0
      %v573 = vsel %vm562, %v561, 0
      %vm575 = vcmask 1046528
      %v577 = vsel %vm575, %v532, 0
      %v580 = vsel %vm575, %v533, 0
      %582 = vmatpush.bf16.msra.mxu0 0
      %583 = vmatpush.bf16.msra.mxu0 0
      %584 = vmatpush.bf16.msra.mxu0 0
      %585 = vmatpush.bf16.msra.mxu0 0
      %586 = vmatpush.bf16.msra.mxu0 0
      %587 = vmatpush.bf16.msra.mxu0 0
      %588 = vmatpush.bf16.msra.mxu0 %v577
      %589 = vmatpush.bf16.msra.mxu0 %v530
      %590 = vmatmul.bf16.gmra.mxu0 %v564
      %v591 = vpop.f32.mrf.mxu0
      %v592 = vadd.f32 0.0, %v591
      %v593 = vpop.f32.mrf.mxu0
      %v594 = vadd.f32 0.0, %v593
      %595 = vmatmul.bf16.gmra.mxu0 %v567
      %v596 = vpop.f32.mrf.mxu0
      %v597 = vadd.f32 0.0, %v596
      %v598 = vpop.f32.mrf.mxu0
      %v599 = vadd.f32 0.0, %v598
      %600 = vmatmul.bf16.gmra.mxu0 %v570
      %v601 = vpop.f32.mrf.mxu0
      %v602 = vadd.f32 0.0, %v601
      %v603 = vpop.f32.mrf.mxu0
      %v604 = vadd.f32 0.0, %v603
      %605 = vmatmul.bf16.gmra.mxu0 %v573
      %v606 = vpop.f32.mrf.mxu0
      %v607 = vadd.f32 0.0, %v606
      %v608 = vpop.f32.mrf.mxu0
      %v609 = vadd.f32 0.0, %v608
      %610 = vdwg.mxu0
      %611 = vmatpush.bf16.msra.mxu0 0
      %612 = vmatpush.bf16.msra.mxu0 0
      %613 = vmatpush.bf16.msra.mxu0 0
      %614 = vmatpush.bf16.msra.mxu0 0
      %615 = vmatpush.bf16.msra.mxu0 0
      %616 = vmatpush.bf16.msra.mxu0 0
      %617 = vmatpush.bf16.msra.mxu0 %v580
      %618 = vmatpush.bf16.msra.mxu0 %v531
      %619 = vmatmul.bf16.gmra.mxu0 %v564
      %v620 = vpop.f32.mrf.mxu0
      %v621 = vadd.f32 0.0, %v620
      %v622 = vpop.f32.mrf.mxu0
      %v623 = vadd.f32 0.0, %v622
      %624 = vmatmul.bf16.gmra.mxu0 %v567
      %v625 = vpop.f32.mrf.mxu0
      %v626 = vadd.f32 0.0, %v625
      %v627 = vpop.f32.mrf.mxu0
      %v628 = vadd.f32 0.0, %v627
      %629 = vmatmul.bf16.gmra.mxu0 %v570
      %v630 = vpop.f32.mrf.mxu0
      %v631 = vadd.f32 0.0, %v630
      %v632 = vpop.f32.mrf.mxu0
      %v633 = vadd.f32 0.0, %v632
      %634 = vmatmul.bf16.gmra.mxu0 %v573
      %v635 = vpop.f32.mrf.mxu0
      %v636 = vadd.f32 0.0, %v635
      %v637 = vpop.f32.mrf.mxu0
      %v638 = vadd.f32 0.0, %v637
      %639 = vdwg.mxu0
      %v640 = vld [vmem:[%s4] sm:$0xff]
      %v641 = vld [vmem:[%s4 + $0x8] sm:$0x7f]
      %643 = vset.pattern.permute.xlu0 0
      %644 = vperm.xlu0 %643, %v640
      %v645 = vpop.permute.xlu0 %644
      %648 = vset.pattern.permute.xlu0 0
      %649 = vperm.xlu0 %648, %v641
      %v650 = vpop.permute.xlu0 %649
      %v652 = vadd.f32 %v592, %v645
      %v653 = vadd.f32 %v621, %v645
      %v654 = vadd.f32 %v594, %v650
      %v655 = vadd.f32 %v623, %v650
      %vm656 = vcmp.gt.f32.partialorder %v652, 0.0
      %vm657 = vcmp.gt.f32.partialorder %v653, 0.0
      %vm658 = vcmp.gt.f32.partialorder %v654, 0.0
      %vm659 = vcmp.gt.f32.partialorder %v655, 0.0
      %v660 = vmul.f32 %v652, 0.01
      %v661 = vmul.f32 %v653, 0.01
      %v662 = vmul.f32 %v654, 0.01
      %v663 = vmul.f32 %v655, 0.01
      %v664 = vsel %vm656, %v652, %v660
      %v665 = vsel %vm657, %v653, %v661
      %v666 = vsel %vm658, %v654, %v662
      %v667 = vsel %vm659, %v655, %v663
      %v668 = vpack.c.bf16 %v666, %v664
      %v669 = vpack.c.bf16 %v667, %v665
      %v670 = vld [vmem:[%s5] sm:$0xf]
      %v671 = vld [vmem:[%s5 + $0x4] sm:$0xf]
      %v672 = vld [vmem:[%s5 + $0x8] sm:$0xf]
      %v673 = vld [vmem:[%s5 + $0xc] sm:$0xf]
      %v674 = vld [vmem:[%s5 + $0x10] sm:$0xf]
      %v675 = vld [vmem:[%s5 + $0x14] sm:$0x7]
      %v682 = vunpack.c.l.b16 %v670
      %v683 = vunpack.c.l.b16 %v671
      %v684 = vunpack.c.l.b16 %v672
      %v685 = vunpack.c.l.b16 %v673
      %v686 = vunpack.c.l.b16 %v674
      %v687 = vunpack.c.l.b16 %v675
      %v688 = vpack.c.b16 %v683, %v682
      %v689 = vpack.c.b16 %v685, %v684
      %v690 = vpack.c.b16 %v687, %v686
      %vm691 = vcmask 121856
      %v693 = vsel %vm691, %v688, 0
      %v696 = vsel %vm691, %v689, 0
      %v699 = vsel %vm691, %v690, 0
      %vm701 = vcmask 1047552
      %v702 = vsel %vm575, 4294967295, 65535
      %v703 = vsel %vm701, %v702, 0
      %v705 = vand.u32 %v668, %v703
      %v708 = vand.u32 %v669, %v703
      %710 = vmatpush.bf16.msra.mxu0 0
      %711 = vmatpush.bf16.msra.mxu0 0
      %712 = vmatpush.bf16.msra.mxu0 0
      %713 = vmatpush.bf16.msra.mxu0 0
      %714 = vmatpush.bf16.msra.mxu0 0
      %715 = vmatpush.bf16.msra.mxu0 0
      %716 = vmatpush.bf16.msra.mxu0 0
      %717 = vmatpush.bf16.msra.mxu0 %v705
      %718 = vmatmul.bf16.gmra.mxu0 %v693
      %v719 = vpop.f32.mrf.mxu0
      %v720 = vadd.f32 0.0, %v719
      %v721 = vpop.f32.mrf.mxu0
      %v722 = vadd.f32 0.0, %v721
      %723 = vmatmul.bf16.gmra.mxu0 %v696
      %v724 = vpop.f32.mrf.mxu0
      %v725 = vadd.f32 0.0, %v724
      %v726 = vpop.f32.mrf.mxu0
      %v727 = vadd.f32 0.0, %v726
      %728 = vmatmul.bf16.gmra.mxu0 %v699
      %v729 = vpop.f32.mrf.mxu0
      %v730 = vadd.f32 0.0, %v729
      %v731 = vpop.f32.mrf.mxu0
      %v732 = vadd.f32 0.0, %v731
      %733 = vdwg.mxu0
      %734 = vmatpush.bf16.msra.mxu0 0
      %735 = vmatpush.bf16.msra.mxu0 0
      %736 = vmatpush.bf16.msra.mxu0 0
      %737 = vmatpush.bf16.msra.mxu0 0
      %738 = vmatpush.bf16.msra.mxu0 0
      %739 = vmatpush.bf16.msra.mxu0 0
      %740 = vmatpush.bf16.msra.mxu0 0
      %741 = vmatpush.bf16.msra.mxu0 %v708
      %742 = vmatmul.bf16.gmra.mxu0 %v693
      %v743 = vpop.f32.mrf.mxu0
      %v744 = vadd.f32 0.0, %v743
      %v745 = vpop.f32.mrf.mxu0
      %v746 = vadd.f32 0.0, %v745
      %747 = vmatmul.bf16.gmra.mxu0 %v696
      %v748 = vpop.f32.mrf.mxu0
      %v749 = vadd.f32 0.0, %v748
      %v750 = vpop.f32.mrf.mxu0
      %v751 = vadd.f32 0.0, %v750
      %752 = vmatmul.bf16.gmra.mxu0 %v699
      %v753 = vpop.f32.mrf.mxu0
      %v754 = vadd.f32 0.0, %v753
      %v755 = vpop.f32.mrf.mxu0
      %v756 = vadd.f32 0.0, %v755
      %757 = vdwg.mxu0
      %v758 = vadd.f32 %v597, %v720
      %v759 = vadd.f32 %v626, %v744
      %v760 = vadd.f32 %v599, %v722
      %v761 = vadd.f32 %v628, %v746
      %v762 = vld [vmem:[%s6] sm:$0xff]
      %v763 = vld [vmem:[%s6 + $0x8] sm:$0x7f]
      %765 = vset.pattern.permute.xlu0 0
      %766 = vperm.xlu0 %765, %v762
      %v767 = vpop.permute.xlu0 %766
      %770 = vset.pattern.permute.xlu0 0
      %771 = vperm.xlu0 %770, %v763
      %v772 = vpop.permute.xlu0 %771
      %v774 = vadd.f32 %v758, %v767
      %v775 = vadd.f32 %v759, %v767
      %v776 = vadd.f32 %v760, %v772
      %v777 = vadd.f32 %v761, %v772
      %vm778 = vcmp.gt.f32.partialorder %v774, 0.0
      %vm779 = vcmp.gt.f32.partialorder %v775, 0.0
      %vm780 = vcmp.gt.f32.partialorder %v776, 0.0
      %vm781 = vcmp.gt.f32.partialorder %v777, 0.0
      %v782 = vmul.f32 %v774, 0.01
      %v783 = vmul.f32 %v775, 0.01
      %v784 = vmul.f32 %v776, 0.01
      %v785 = vmul.f32 %v777, 0.01
      %v786 = vsel %vm778, %v774, %v782
      %v787 = vsel %vm779, %v775, %v783
      %v788 = vsel %vm780, %v776, %v784
      %v789 = vsel %vm781, %v777, %v785
      %v790 = vpack.c.bf16 %v788, %v786
      %v791 = vpack.c.bf16 %v789, %v787
      %v792 = vld [vmem:[%s7] sm:$0xf]
      %v793 = vld [vmem:[%s7 + $0x4] sm:$0xf]
      %v794 = vld [vmem:[%s7 + $0x8] sm:$0xf]
      %v795 = vld [vmem:[%s7 + $0xc] sm:$0x7]
      %v800 = vunpack.c.l.b16 %v792
      %v801 = vunpack.c.l.b16 %v793
      %v802 = vunpack.c.l.b16 %v794
      %v803 = vunpack.c.l.b16 %v795
      %v804 = vpack.c.b16 %v801, %v800
      %v805 = vpack.c.b16 %v803, %v802
      %v807 = vsel %vm691, %v804, 0
      %v810 = vsel %vm691, %v805, 0
      %v813 = vand.u32 %v790, %v703
      %v816 = vand.u32 %v791, %v703
      %818 = vmatpush.bf16.msra.mxu0 0
      %819 = vmatpush.bf16.msra.mxu0 0
      %820 = vmatpush.bf16.msra.mxu0 0
      %821 = vmatpush.bf16.msra.mxu0 0
      %822 = vmatpush.bf16.msra.mxu0 0
      %823 = vmatpush.bf16.msra.mxu0 0
      %824 = vmatpush.bf16.msra.mxu0 0
      %825 = vmatpush.bf16.msra.mxu0 %v813
      %826 = vmatmul.bf16.gmra.mxu0 %v807
      %v827 = vpop.f32.mrf.mxu0
      %v828 = vadd.f32 0.0, %v827
      %v829 = vpop.f32.mrf.mxu0
      %v830 = vadd.f32 0.0, %v829
      %831 = vmatmul.bf16.gmra.mxu0 %v810
      %v832 = vpop.f32.mrf.mxu0
      %v833 = vadd.f32 0.0, %v832
      %v834 = vpop.f32.mrf.mxu0
      %v835 = vadd.f32 0.0, %v834
      %836 = vdwg.mxu0
      %837 = vmatpush.bf16.msra.mxu0 0
      %838 = vmatpush.bf16.msra.mxu0 0
      %839 = vmatpush.bf16.msra.mxu0 0
      %840 = vmatpush.bf16.msra.mxu0 0
      %841 = vmatpush.bf16.msra.mxu0 0
      %842 = vmatpush.bf16.msra.mxu0 0
      %843 = vmatpush.bf16.msra.mxu0 0
      %844 = vmatpush.bf16.msra.mxu0 %v816
      %845 = vmatmul.bf16.gmra.mxu0 %v807
      %v846 = vpop.f32.mrf.mxu0
      %v847 = vadd.f32 0.0, %v846
      %v848 = vpop.f32.mrf.mxu0
      %v849 = vadd.f32 0.0, %v848
      %850 = vmatmul.bf16.gmra.mxu0 %v810
      %v851 = vpop.f32.mrf.mxu0
      %v852 = vadd.f32 0.0, %v851
      %v853 = vpop.f32.mrf.mxu0
      %v854 = vadd.f32 0.0, %v853
      %855 = vdwg.mxu0
      %v856 = vadd.f32 %v602, %v725
      %v857 = vadd.f32 %v631, %v749
      %v858 = vadd.f32 %v604, %v727
      %v859 = vadd.f32 %v633, %v751
      %v860 = vadd.f32 %v607, %v730
      %v861 = vadd.f32 %v636, %v754
      %v862 = vadd.f32 %v609, %v732
      %v863 = vadd.f32 %v638, %v756
      %v864 = vadd.f32 %v856, %v828
      %v865 = vadd.f32 %v857, %v847
      %v866 = vadd.f32 %v858, %v830
      %v867 = vadd.f32 %v859, %v849
      %v868 = vadd.f32 %v860, %v833
      %v869 = vadd.f32 %v861, %v852
      %v870 = vadd.f32 %v862, %v835
      %v871 = vadd.f32 %v863, %v854
      %v872 = vld [vmem:[%s8] sm:$0xff]
      %v873 = vld [vmem:[%s8 + $0x8] sm:$0xff]
      %v874 = vld [vmem:[%s8 + $0x10] sm:$0xff]
      %v875 = vld [vmem:[%s8 + $0x18] sm:$0x3f]
      %877 = vset.pattern.permute.xlu0 0
      %878 = vperm.xlu0 %877, %v872
      %v879 = vpop.permute.xlu0 %878
      %882 = vset.pattern.permute.xlu0 0
      %883 = vperm.xlu0 %882, %v873
      %v884 = vpop.permute.xlu0 %883
      %887 = vset.pattern.permute.xlu0 0
      %888 = vperm.xlu0 %887, %v874
      %v889 = vpop.permute.xlu0 %888
      %892 = vset.pattern.permute.xlu0 0
      %893 = vperm.xlu0 %892, %v875
      %v894 = vpop.permute.xlu0 %893
      %v896 = vadd.f32 %v864, %v879
      %v897 = vadd.f32 %v865, %v879
      %v898 = vadd.f32 %v866, %v884
      %v899 = vadd.f32 %v867, %v884
      %v900 = vadd.f32 %v868, %v889
      %v901 = vadd.f32 %v869, %v889
      %v902 = vadd.f32 %v870, %v894
      %v903 = vadd.f32 %v871, %v894
      %904 = vst [vmem:[%s370] sm:$0xff] %v896
      %905 = vst [vmem:[%s370 + $0x8] sm:$0xff] %v897
      %906 = vst [vmem:[%s370 + $0x10] sm:$0xff] %v898
      %907 = vst [vmem:[%s370 + $0x18] sm:$0xff] %v899
      %908 = vst [vmem:[%s370 + $0x20] sm:$0xff] %v900
      %909 = vst [vmem:[%s370 + $0x28] sm:$0xff] %v901
      %910 = vst [vmem:[%s370 + $0x30] sm:$0x3f] %v902
      %911 = vst [vmem:[%s370 + $0x38] sm:$0x3f] %v903
      %s912 = smul.u32 2, %s25
      %p913 = scmp.lt.s32.totalorder %s24, 1
      %s914 = scalar_select %p913, %s24, 1
      %p915 = scmp.lt.s32.totalorder %s912, 1
      %s916 = scalar_select %p915, %s912, 1
      %s917 = smul.addr %s914, 8
      %s918 = sadd.s32 %s916, %s917
      %s919 = smul.addr %s918, 8
      %s920 = scalar_lea.vmem %s9, %s919
      // Predicated region
      $region57: #{tpu_custom_call.1} parent=55 // pred_check
        %p921 = pneg %p248
      $region58: #{tpu_custom_call.1} parent=55 // pred_check_branch
        %923 = sbr.rel (%p921) target = $region60
      $region59: #{tpu_custom_call.1} parent=55 // pred_region
        %s924 = smul.u32 2, %s25
      $region60: #{tpu_custom_call.1} parent=55 // pred_fallthru
        _
    $region56: #{tpu_custom_call.1} parent=5 // pred_fallthru
      _
    %p925 = scmp.le.s32.totalorder 2, %s15
    // Predicated region
    $region61: #{tpu_custom_call.1} parent=5 // pred_check
      %p926 = pneg %p925
    $region62: #{tpu_custom_call.1} parent=5 // pred_check_branch
      %928 = sbr.rel (%p926) target = $region64
    $region63: #{tpu_custom_call.1} parent=5 // pred_region
      %s929 = ssub.s32 %s15, 2
      // Predicated region
      $region65: #{tpu_custom_call.1} parent=63 // pred_check
        %p930 = pneg %p254
      $region66: #{tpu_custom_call.1} parent=63 // pred_check_branch
        %932 = sbr.rel (%p930) target = $region68
      $region67: #{tpu_custom_call.1} parent=63 // pred_region
        %s933 = smul.u32 2, %s27
        %p934 = scmp.lt.s32.totalorder %s26, 1
        %s935 = scalar_select %p934, %s26, 1
        %p936 = scmp.lt.s32.totalorder %s933, 1
        %s937 = scalar_select %p936, %s933, 1
        %s938 = smul.addr %s935, 8
        %s939 = sadd.s32 %s937, %s938
        %s940 = smul.addr %s939, 8
        %s941 = scalar_lea.vmem %s9, %s940
      $region68: #{tpu_custom_call.1} parent=63 // pred_fallthru
        _
    $region64: #{tpu_custom_call.1} parent=5 // pred_fallthru
      _
  $region6: #{tpu_custom_call.1} parent=0 // loop_footer
    %s19 = sadd.s32 1, %s15
  $region7: #{tpu_custom_call.1} parent=0 // loop_footer_branch
    %14 = sbr.rel target = $region3
  $region8: #{tpu_custom_call.1} parent=0 // loop_exit
    _

</llo_original>
